<compile_context>
chip_gen: v7x
topology: tpu7x:2x2x1
jax: 0.10.0
libtpu: 0.0.40
codegen_flags: <defaults>
</compile_context>

<pallas_src>
import jax
import jax.numpy as jnp
from jax.experimental import pallas as pl
from jax.experimental.pallas import tpu as pltpu


def substitute_kernel(v_ref, x_ref, o_ref):
    # v_ref : SMEM (N-1,)  -- only v[0] matters (the last loop iteration wins)
    # x_ref : VMEM (R, TC) -- rows 0..R-1 of flattened x, one column tile
    # o_ref : VMEM (R, TC) -- aliased with x in HBM
    # Copy the small resident block unchanged, then overwrite row 1 with the
    # blend.  Blend math is done in f32 and cast back on store (bf16-safe).
    o_ref[...] = x_ref[...]
    vv = v_ref[0].astype(jnp.float32)
    x0 = x_ref[0:1, :].astype(jnp.float32)
    x1 = x_ref[1:2, :].astype(jnp.float32)
    o_ref[1:2, :] = (vv * x1 + (1.0 - vv) * x0).astype(o_ref.dtype)


def substitute_layer(x, v, *, xla_fast_path_bytes=0):
    assert x.ndim == 4
    N, C, H, W = x.shape
    assert N == v.shape[0] + 1 and N >= 2
    D = int(C * H * W)
    itemsize = jnp.dtype(x.dtype).itemsize

    # Optional tiny-tensor fast path (pure XLA dynamic-update-slice); disabled
    # by default so the Pallas path is always exercised here.
    if x.size * itemsize < xla_fast_path_bytes:
        return x.at[1].set(v[0] * x[1] + (1.0 - v[0]) * x[0])

    # Flatten to (N, D): contiguous reshape, a free bitcast in XLA (no copy).
    xf = x.reshape(N, D)

    # Block rows: enough to cover rows 0 and 1, rounded to the dtype's sublane
    # packing, or the full N when N is smaller (block dim == array dim is
    # always legal, even if not a multiple of 8).
    pack = {4: 8, 2: 16, 1: 32}.get(itemsize, 8)
    R = N if N <= pack else pack

    # Column tiling.  If D is a 128-multiple, cap tiles at ~2 MiB so the four
    # live double-buffered blocks stay well under v5e/v6e/v7x VMEM budgets and
    # multiple column steps can be sharded across v7x's two TensorCores.
    # Otherwise use the full D as a single block (legal; masked ragged lanes).
    if D % 128 == 0:
        max_cols = max(128, ((2 * 1024 * 1024) // (R * itemsize)) // 128 * 128)
        TC = min(D, max_cols)
    else:
        TC = D
        # TODO(synk): for huge non-128-multiple D this single block could bust
        # VMEM; would need a padded column split in that regime.
    grid = (pl.cdiv(D, TC),)

    out = pl.pallas_call(
        substitute_kernel,
        out_shape=jax.ShapeDtypeStruct((N, D), x.dtype),
        grid=grid,
        in_specs=[
            # v lives in SMEM so v[0] is a cheap scalar read in the kernel.
            pl.BlockSpec(memory_space=pltpu.MemorySpace.SMEM),
            # Only row-block 0 (contains rows 0 and 1), tiled over columns.
            pl.BlockSpec((R, TC), lambda j: (0, j)),
        ],
        out_specs=pl.BlockSpec((R, TC), lambda j: (0, j)),
        # Output buffer IS the input buffer: rows >= R are never written and
        # keep their original values through the alias.
        input_output_aliases={1: 0},
        compiler_params=pltpu.CompilerParams(
            dimension_semantics=("parallel",)),
        cost_estimate=pl.CostEstimate(
            flops=3 * D,
            transcendentals=0,
            bytes_accessed=2 * R * D * itemsize + v.size * jnp.dtype(v.dtype).itemsize),
    )(v, xf)

    return out.reshape(N, C, H, W)


def _reference(x, v):
    # Pure-JAX reference of the exact PyTorch semantics: the descending loop's
    # final iteration is i == 1, so only row 1 is blended (with weight v[0]).
    return x.at[1].set(v[0] * x[1] + (1.0 - v[0]) * x[0])


if __name__ == "__main__":
    key = jax.random.PRNGKey(0)

    test_shapes = [
        (2, 4, 16, 16),    # primary small shape
        (5, 4, 16, 16),    # N > 2: only the last loop iteration survives
        (12, 4, 16, 16),   # N > 8: rows 8..11 preserved purely via the alias
        (5, 3, 7, 5),      # non-128-multiple feature size: full-D block, no pad
    ]

    for (N, C, H, W) in test_shapes:
        key, k1, k2 = jax.random.split(key, 3)
        x = jax.random.normal(k1, (N, C, H, W), dtype=jnp.float32)
        v = jax.random.uniform(k2, (N - 1,), dtype=jnp.float32)

        y_ref = _reference(x, v)
        y = jax.block_until_ready(substitute_layer(x, v))

        assert y.shape == x.shape and y.dtype == x.dtype
        assert jnp.allclose(y, y_ref, atol=1e-6), f"mismatch for shape {(N, C, H, W)}"

    print("KERNEL_OK")
</pallas_src>

<mosaic_0001>
module attributes {stable_mosaic.version = 11 : i64} {
  func.func @substitute_kernel(%arg0: i32, %arg1: memref<1xf32, #tpu.memory_space<smem>>, %arg2: memref<2x1024xf32, #tpu.memory_space<vmem>>, %arg3: memref<2x1024xf32, #tpu.memory_space<vmem>>) attributes {dimension_semantics = [#tpu.dimension_semantics<parallel>], iteration_bounds = array<i64: 1>, scalar_prefetch = 0 : i64, scratch_operands = 0 : i64, tpu.core_type = #tpu.core_type<tc>, window_params = [{transform_indices = @transform_0, window_bounds = array<i64: 1>}, {transform_indices = @transform_1, window_bounds = array<i64: 2, 1024>}, {transform_indices = @transform_2, window_bounds = array<i64: 2, 1024>}]} {
    %c0 = arith.constant 0 : index
    %c0_0 = arith.constant 0 : index
    %0 = vector.load %arg2[%c0, %c0_0] : memref<2x1024xf32, #tpu.memory_space<vmem>>, vector<2x1024xf32>
    %c0_1 = arith.constant 0 : index
    %c0_2 = arith.constant 0 : index
    %1 = vector.load %arg3[%c0_1, %c0_2] : memref<2x1024xf32, #tpu.memory_space<vmem>>, vector<2x1024xf32>
    tpu.vector_store %arg3[%c0_1, %c0_2], %0 {strides = array<i32>} : memref<2x1024xf32, #tpu.memory_space<vmem>>, vector<2x1024xf32>,
    %c0_3 = arith.constant 0 : index
    %2 = memref.load %arg1[%c0_3] : memref<1xf32, #tpu.memory_space<smem>>
    %c0_4 = arith.constant 0 : index
    %c0_5 = arith.constant 0 : index
    %3 = vector.load %arg2[%c0_4, %c0_5] : memref<2x1024xf32, #tpu.memory_space<vmem>>, vector<1x1024xf32>
    %c1 = arith.constant 1 : index
    %c0_6 = arith.constant 0 : index
    %4 = vector.load %arg2[%c1, %c0_6] : memref<2x1024xf32, #tpu.memory_space<vmem>>, vector<1x1024xf32>
    %5 = vector.broadcast %2 : f32 to vector<1x1024xf32>
    %6 = arith.mulf %5, %4 : vector<1x1024xf32>
    %cst = arith.constant 1.000000e+00 : f32
    %7 = arith.subf %cst, %2 : f32
    %8 = vector.broadcast %7 : f32 to vector<1x1024xf32>
    %9 = arith.mulf %8, %3 : vector<1x1024xf32>
    %10 = arith.addf %6, %9 : vector<1x1024xf32>
    %c1_7 = arith.constant 1 : index
    %c0_8 = arith.constant 0 : index
    %11 = vector.load %arg3[%c1_7, %c0_8] : memref<2x1024xf32, #tpu.memory_space<vmem>>, vector<1x1024xf32>
    tpu.vector_store %arg3[%c1_7, %c0_8], %10 {strides = array<i32>} : memref<2x1024xf32, #tpu.memory_space<vmem>>, vector<1x1024xf32>,
    return
  }
  func.func @transform_0(%arg0: i32) -> i32 {
    %c0_i32 = arith.constant 0 : i32
    %c0_i32_0 = arith.constant 0 : i32
    return %c0_i32 : i32
  }
  func.func @transform_1(%arg0: i32) -> (i32, i32) {
    %c0_i32 = arith.constant 0 : i32
    %c0_i32_0 = arith.constant 0 : i32
    return %c0_i32, %arg0 : i32, i32
  }
  func.func @transform_2(%arg0: i32) -> (i32, i32) {
    %c0_i32 = arith.constant 0 : i32
    %c0_i32_0 = arith.constant 0 : i32
    return %c0_i32, %arg0 : i32, i32
  }
}

</mosaic_0001>

<llo_original>
// kernel: tpu_custom_call.1
$region0: #{tpu_custom_call.1}
  #allocation0 [shape = 'u32[]', space=smem, size = 0x4, offset = 0x4, fixed_abs, tag = 'smem constant byte address 0x4 - core index']
  #allocation1 [shape = 'u32[144,128]{1,0:T(1,128)}', space=vmem, size = 0x12000, scoped, tag = 'internal scratch']
  #allocation2 [shape = 'f32[1]{0:T(128)S(6)}', space=smem, size = 0x200, scoped, tag = 'scoped memory for tpu_custom_call.1']
  %s0 = inlined_call_operand.<no memory space> [shape: f32[1], index: 0, kind: input, shape index: {}]
  %s1 = inlined_call_operand.hbm [shape: f32[2,1024], index: 1, kind: input, shape index: {}, may-alias: {1,2}]
  %s2 = inlined_call_operand.hbm [shape: f32[2,1024], index: 2, kind: output, shape index: {}, may-alias: {1,2}]
  %s3 = sld [smem:[#allocation0]]
  $region22: #{tpu_custom_call.1} parent=0
    _
  %s5 = ssub.s32 1, %s3
  %s6 = scalar_select 0, %s5, %s3
  %7 = sst [smem:[#allocation2]] %s0
  $region1: #{tpu_custom_call.1} parent=0
    #allocation3 [shape = 'u8[8192]{0}', space=vmem, size = 0x2000, scoped, tag = 'input window, operand 1, single buffered']
    #allocation4 [shape = 's32[1]{0}', space=sflag, size = 0x4, scoped, tag = 'scoped memory for tpu_custom_call.1']
    #allocation5 [shape = 's32[1]{0}', space=sflag, size = 0x4, scoped, tag = 'scoped memory for tpu_custom_call.1']
    #allocation6 [shape = 'u8[8192]{0}', space=vmem, size = 0x2000, scoped, tag = 'output window, operand 0, single buffered']
    %8 = vsyncpa [#allocation4], 0
    %9 = vsyncpa [#allocation5], 0
    // Predicated region
    $region2: #{tpu_custom_call.1} parent=1 // pred_check
      _
    $region3: #{tpu_custom_call.1} parent=1 // pred_check_branch
      %11 = sbr.rel (0) target = $region5
    $region4: #{tpu_custom_call.1} parent=1 // pred_region
      _
    $region5: #{tpu_custom_call.1} parent=1 // pred_fallthru
      _
    // Predicated region
    $region6: #{tpu_custom_call.1} parent=1 // pred_check
      _
    $region7: #{tpu_custom_call.1} parent=1 // pred_check_branch
      %13 = sbr.rel (0) target = $region9
    $region8: #{tpu_custom_call.1} parent=1 // pred_region
      %s15 = ssub.s32 256, 256
      %16 = vsyncadd [#allocation4], %s15
      %s18 = sshll.u32 [#allocation3], 4
      %s19 = int_to_ptr.vmem [resolvable:$true] %s18
      %21 = dma.hbm_to_vmem [thread:$0]  %s1, 256, %s19, [#allocation4]
    $region9: #{tpu_custom_call.1} parent=1 // pred_fallthru
      _
    // Predicated region
    $region10: #{tpu_custom_call.1} parent=1 // pred_check
      _
    $region11: #{tpu_custom_call.1} parent=1 // pred_check_branch
      %23 = sbr.rel (0) target = $region13
    $region12: #{tpu_custom_call.1} parent=1 // pred_region
      %24 = dma.done [#allocation4], 256
    $region13: #{tpu_custom_call.1} parent=1 // pred_fallthru
      _
    %v25 = vld [vmem:[#allocation3] sm:$0xff]
    %v26 = vld [vmem:[#allocation3 + $0x8] sm:$0xff]
    %27 = vst [vmem:[#allocation6] sm:$0xff] %v25
    %28 = vst [vmem:[#allocation6 + $0x8] sm:$0xff] %v26
    %s29 = sld [smem:[#allocation2]]
    %v30 = vld [vmem:[#allocation3] ss:$2 sm:$0xff]
    %s31 = scalar_lea.vmem [#allocation3], 1
    %v32 = vld [vmem:[%s31] ss:$2 sm:$0xff]
    %v33 = vstv %s29
    %v34 = vmul.f32 %v33, %v32
    %s35 = ssub.f32 1.0, %s29
    %v36 = vstv %s35
    %v37 = vmul.f32 %v36, %v30
    %v38 = vadd.f32 %v34, %v37
    %s39 = scalar_lea.vmem [#allocation6], 1
    %40 = vst [vmem:[%s39] ss:$2 sm:$0xff] %v38
    // Predicated region
    $region14: #{tpu_custom_call.1} parent=1 // pred_check
      _
    $region15: #{tpu_custom_call.1} parent=1 // pred_check_branch
      %42 = sbr.rel (0) target = $region17
    $region16: #{tpu_custom_call.1} parent=1 // pred_region
      %s44 = ssub.s32 256, 256
      %45 = vsyncadd [#allocation5], %s44
      %s47 = sshll.u32 [#allocation6], 4
      %s48 = int_to_ptr.vmem [resolvable:$true] %s47
      %50 = dma.vmem_to_hbm [thread:$0]  %s48, 256, %s2, [#allocation5]
    $region17: #{tpu_custom_call.1} parent=1 // pred_fallthru
      _
    // Predicated region
    $region18: #{tpu_custom_call.1} parent=1 // pred_check
      _
    $region19: #{tpu_custom_call.1} parent=1 // pred_check_branch
      %52 = sbr.rel (0) target = $region21
    $region20: #{tpu_custom_call.1} parent=1 // pred_region
      %53 = dma.done [#allocation5], 256
    $region21: #{tpu_custom_call.1} parent=1 // pred_fallthru
      _
    %54 = vsyncpa [#allocation4], 1
    %55 = vsyncpa [#allocation5], 1

</llo_original>
